<compile_context>
chip_gen: v5e
topology: v5e:2x2
jax: 0.10.0
libtpu: 0.0.40
codegen_flags: <defaults>
</compile_context>

<pallas_src>
import jax
import jax.numpy as jnp
from jax.experimental import pallas as pl
from jax.experimental.pallas import tpu as pltpu


def _make_gnn_kernel(reassociate: bool, precision):
    """Build the kernel body for a static (reassociate, precision) config."""

    def kernel(w1_ref, w2_ref, adj_ref, x_ref, o_ref):
        # Single grid step: every ref holds the full batched operand in VMEM.
        w1 = w1_ref[...]     # (B, N, N)
        w2 = w2_ref[...]     # (B, N, N)
        adj = adj_ref[...]   # (B, N, N)
        x = x_ref[...]       # (B, N, F)

        def mm(a, b):
            # Batched MXU matmul, f32 accumulation.
            return jnp.einsum("bij,bjk->bik", a, b,
                              preferred_element_type=jnp.float32,
                              precision=precision)

        if reassociate:
            # out = w1 @ x + w2 @ (adj @ x): avoids the (B, N, N) support
            # intermediate entirely; chosen when 6*N^2*F < 2*N^3 + 2*N^2*F.
            ax = mm(adj, x).astype(x.dtype)
            out = mm(w1, x) + mm(w2, ax)
        else:
            # Fused (module-order) form; weight1 add runs on the VPU in f32.
            # NOTE: on the bf16 path `support` (which already holds the f32
            # w1 add) is rounded to bf16 before the second matmul -- by design.
            support = (w1.astype(jnp.float32) + mm(w2, adj)).astype(w1.dtype)
            out = mm(support, x)

        o_ref[...] = out.astype(o_ref.dtype)

    return kernel


def graph_neural_net_forward(weight1, weight2, x, adj, *,
                             use_bf16_mxu=False,
                             precision=jax.lax.Precision.DEFAULT):
    """Pallas forward for GraphNeuralNet.

    weight1, weight2, adj : (B, N, N);  x : (B, N, F)  ->  (B, N, F)

    `precision` only affects the MXU lowering of f32 operands; keep DEFAULT in
    production, pass HIGHEST only for tight numerical validation.
    `use_bf16_mxu=True` casts operands to bf16 *here* (outside the kernel) so
    HBM->VMEM DMA bytes and VMEM footprint halve; output stays in x's dtype.
    """
    B, N, _ = weight1.shape
    F = x.shape[-1]
    out_dtype = x.dtype

    if use_bf16_mxu:
        weight1 = weight1.astype(jnp.bfloat16)
        weight2 = weight2.astype(jnp.bfloat16)
        adj = adj.astype(jnp.bfloat16)
        x = x.astype(jnp.bfloat16)
        precision = jax.lax.Precision.DEFAULT  # single bf16 MXU pass

    # Static FLOP-based dispatch between the fused and reassociated forms.
    fused_flops = 2 * N * N * N + 2 * N * N * F + N * N
    reassoc_flops = 6 * N * N * F + N * F
    reassociate = reassoc_flops < fused_flops

    itemsize = jnp.dtype(x.dtype).itemsize
    flops = B * min(fused_flops, reassoc_flops)
    bytes_accessed = ((weight1.size + weight2.size + adj.size + x.size) * itemsize
                      + B * N * F * jnp.dtype(out_dtype).itemsize)

    kernel = _make_gnn_kernel(reassociate, precision)

    return pl.pallas_call(
        kernel,
        out_shape=jax.ShapeDtypeStruct((B, N, F), out_dtype),
        grid_spec=pltpu.PrefetchScalarGridSpec(
            num_scalar_prefetch=0,
            grid=(1,),  # merged batch: one step, one contiguous DMA per array
            in_specs=[
                pl.BlockSpec((B, N, N), lambda i: (0, 0, 0)),  # weight1
                pl.BlockSpec((B, N, N), lambda i: (0, 0, 0)),  # weight2
                pl.BlockSpec((B, N, N), lambda i: (0, 0, 0)),  # adj
                pl.BlockSpec((B, N, F), lambda i: (0, 0, 0)),  # input x
            ],
            out_specs=pl.BlockSpec((B, N, F), lambda i: (0, 0, 0)),
        ),
        compiler_params=pltpu.CompilerParams(
            dimension_semantics=("arbitrary",)),
        cost_estimate=pl.CostEstimate(
            flops=flops, transcendentals=0, bytes_accessed=bytes_accessed),
    )(weight1, weight2, adj, x)


if __name__ == "__main__":
    # Shapes implied by the module: weight1/weight2/adj (B, N, N), input (B, N, F).
    batch_size = 2
    in_features = 16     # N
    out_features = 32    # F

    key = jax.random.PRNGKey(0)
    kx, kadj, kw1, kw2 = jax.random.split(key, 4)

    x = jax.random.normal(kx, (batch_size, in_features, out_features),
                          dtype=jnp.float32)
    adj = jax.random.normal(kadj, (batch_size, in_features, in_features),
                            dtype=jnp.float32)
    # Random weights so the w2@adj matmul and the add path are exercised
    # (module default init would make output == x trivially).
    weight1 = jax.random.normal(kw1, (batch_size, in_features, in_features),
                                dtype=jnp.float32)
    weight2 = jax.random.normal(kw2, (batch_size, in_features, in_features),
                                dtype=jnp.float32)

    def reference(w1, w2, xx, a):
        support = w1 + jnp.einsum("bij,bjk->bik", w2, a,
                                  precision=jax.lax.Precision.HIGHEST)
        return jnp.einsum("bij,bjk->bik", support, xx,
                          precision=jax.lax.Precision.HIGHEST)

    ref = reference(weight1, weight2, x, adj)

    # (1) Validation run (HIGHEST, f32): tight check against the f32 reference.
    out_val = jax.block_until_ready(graph_neural_net_forward(
        weight1, weight2, x, adj, precision=jax.lax.Precision.HIGHEST))
    assert out_val.shape == (batch_size, in_features, out_features)
    assert jnp.allclose(out_val, ref, atol=1e-4, rtol=1e-4)

    # (2) Production run (DEFAULT precision): MXU may use bf16 operand passes
    #     for f32 inputs, so validate at a bf16-appropriate tolerance.
    out_prod = jax.block_until_ready(
        graph_neural_net_forward(weight1, weight2, x, adj))
    assert jnp.allclose(out_prod, ref, atol=1.0, rtol=5e-2)

    # (3) bf16-MXU path: operands cast to bf16 in the wrapper (half DMA bytes).
    out_bf16 = jax.block_until_ready(graph_neural_net_forward(
        weight1, weight2, x, adj, use_bf16_mxu=True))
    assert out_bf16.dtype == jnp.float32
    assert jnp.allclose(out_bf16, ref, atol=1.0, rtol=5e-2)

    # (4) Module's actual __init__ parameters (w1 = eye, w2 = 0 -> output == x).
    w1_eye = jnp.tile(jnp.eye(in_features, dtype=jnp.float32)[None],
                      (batch_size, 1, 1))
    w2_zero = jnp.zeros((batch_size, in_features, in_features),
                        dtype=jnp.float32)
    out_id = jax.block_until_ready(graph_neural_net_forward(
        w1_eye, w2_zero, x, adj, precision=jax.lax.Precision.HIGHEST))
    assert jnp.allclose(out_id, x, atol=1e-4, rtol=1e-4)

    # (5) Reassociated path (N > 3F triggers out = w1@x + w2@(adj@x)); the
    #     summation order differs from the fused reference, so allow a small
    #     f32 association slack on top of the tight tolerance.
    n2, f2 = 128, 32
    kx2, kadj2, kw12, kw22 = jax.random.split(jax.random.PRNGKey(1), 4)
    x2 = jax.random.normal(kx2, (batch_size, n2, f2), dtype=jnp.float32)
    adj2 = jax.random.normal(kadj2, (batch_size, n2, n2), dtype=jnp.float32)
    w12 = jax.random.normal(kw12, (batch_size, n2, n2), dtype=jnp.float32)
    w22 = jax.random.normal(kw22, (batch_size, n2, n2), dtype=jnp.float32)
    out2 = jax.block_until_ready(graph_neural_net_forward(
        w12, w22, x2, adj2, precision=jax.lax.Precision.HIGHEST))
    ref2 = reference(w12, w22, x2, adj2)
    assert jnp.allclose(out2, ref2, atol=2e-2, rtol=2e-4)

    print("KERNEL_OK")
</pallas_src>

<mosaic_0001>
module attributes {stable_mosaic.version = 11 : i64} {
  func.func @kernel(%arg0: i32, %arg1: memref<2x16x16xf32, #tpu.memory_space<vmem>>, %arg2: memref<2x16x16xf32, #tpu.memory_space<vmem>>, %arg3: memref<2x16x16xf32, #tpu.memory_space<vmem>>, %arg4: memref<2x16x32xf32, #tpu.memory_space<vmem>>, %arg5: memref<2x16x32xf32, #tpu.memory_space<vmem>>) attributes {dimension_semantics = [#tpu.dimension_semantics<arbitrary>], iteration_bounds = array<i64: 1>, scalar_prefetch = 0 : i64, scratch_operands = 0 : i64, tpu.core_type = #tpu.core_type<tc>, window_params = [{pipeline_mode = #tpu.pipeline_mode<synchronous>, transform_indices = @transform_0, window_bounds = array<i64: 2, 16, 16>}, {pipeline_mode = #tpu.pipeline_mode<synchronous>, transform_indices = @transform_1, window_bounds = array<i64: 2, 16, 16>}, {pipeline_mode = #tpu.pipeline_mode<synchronous>, transform_indices = @transform_2, window_bounds = array<i64: 2, 16, 16>}, {pipeline_mode = #tpu.pipeline_mode<synchronous>, transform_indices = @transform_3, window_bounds = array<i64: 2, 16, 32>}, {pipeline_mode = #tpu.pipeline_mode<synchronous>, transform_indices = @transform_4, window_bounds = array<i64: 2, 16, 32>}]} {
    %c0 = arith.constant 0 : index
    %c0_0 = arith.constant 0 : index
    %c0_1 = arith.constant 0 : index
    %0 = vector.load %arg1[%c0, %c0_0, %c0_1] : memref<2x16x16xf32, #tpu.memory_space<vmem>>, vector<2x16x16xf32>
    %c0_2 = arith.constant 0 : index
    %c0_3 = arith.constant 0 : index
    %c0_4 = arith.constant 0 : index
    %1 = vector.load %arg2[%c0_2, %c0_3, %c0_4] : memref<2x16x16xf32, #tpu.memory_space<vmem>>, vector<2x16x16xf32>
    %c0_5 = arith.constant 0 : index
    %c0_6 = arith.constant 0 : index
    %c0_7 = arith.constant 0 : index
    %2 = vector.load %arg3[%c0_5, %c0_6, %c0_7] : memref<2x16x16xf32, #tpu.memory_space<vmem>>, vector<2x16x16xf32>
    %c0_8 = arith.constant 0 : index
    %c0_9 = arith.constant 0 : index
    %c0_10 = arith.constant 0 : index
    %3 = vector.load %arg4[%c0_8, %c0_9, %c0_10] : memref<2x16x32xf32, #tpu.memory_space<vmem>>, vector<2x16x32xf32>
    "tpu.trace_start"() <{level = 10 : i32, message = "bij,bjk->bik"}> : () -> ()
    %cst = arith.constant dense<0.000000e+00> : vector<2x16x16xf32>
    %4 = tpu.matmul %1, %2, %cst {dimension_numbers = #tpu.dot_dimension_numbers<[2], [1], [1], [2], [0, 0, 0, 1, 1, 2], [0], [0]>, precision = #tpu.contract_precision<fp32>} : vector<2x16x16xf32>, vector<2x16x16xf32>, vector<2x16x16xf32> -> vector<2x16x16xf32>
    "tpu.trace_stop"() : () -> ()
    %5 = arith.addf %0, %4 : vector<2x16x16xf32>
    "tpu.trace_start"() <{level = 10 : i32, message = "bij,bjk->bik"}> : () -> ()
    %cst_11 = arith.constant dense<0.000000e+00> : vector<2x16x32xf32>
    %6 = tpu.matmul %5, %3, %cst_11 {dimension_numbers = #tpu.dot_dimension_numbers<[2], [1], [1], [2], [0, 0, 0, 1, 1, 2], [0], [0]>, precision = #tpu.contract_precision<fp32>} : vector<2x16x16xf32>, vector<2x16x32xf32>, vector<2x16x32xf32> -> vector<2x16x32xf32>
    "tpu.trace_stop"() : () -> ()
    %c0_12 = arith.constant 0 : index
    %c0_13 = arith.constant 0 : index
    %c0_14 = arith.constant 0 : index
    %7 = vector.load %arg5[%c0_12, %c0_13, %c0_14] : memref<2x16x32xf32, #tpu.memory_space<vmem>>, vector<2x16x32xf32>
    tpu.vector_store %arg5[%c0_12, %c0_13, %c0_14], %6 {strides = array<i32>} : memref<2x16x32xf32, #tpu.memory_space<vmem>>, vector<2x16x32xf32>,
    return
  }
  func.func @transform_0(%arg0: i32) -> (i32, i32, i32) {
    %c0_i32 = arith.constant 0 : i32
    %c0_i32_0 = arith.constant 0 : i32
    %c0_i32_1 = arith.constant 0 : i32
    %c0_i32_2 = arith.constant 0 : i32
    return %c0_i32, %c0_i32_0, %c0_i32_1 : i32, i32, i32
  }
  func.func @transform_1(%arg0: i32) -> (i32, i32, i32) {
    %c0_i32 = arith.constant 0 : i32
    %c0_i32_0 = arith.constant 0 : i32
    %c0_i32_1 = arith.constant 0 : i32
    %c0_i32_2 = arith.constant 0 : i32
    return %c0_i32, %c0_i32_0, %c0_i32_1 : i32, i32, i32
  }
  func.func @transform_2(%arg0: i32) -> (i32, i32, i32) {
    %c0_i32 = arith.constant 0 : i32
    %c0_i32_0 = arith.constant 0 : i32
    %c0_i32_1 = arith.constant 0 : i32
    %c0_i32_2 = arith.constant 0 : i32
    return %c0_i32, %c0_i32_0, %c0_i32_1 : i32, i32, i32
  }
  func.func @transform_3(%arg0: i32) -> (i32, i32, i32) {
    %c0_i32 = arith.constant 0 : i32
    %c0_i32_0 = arith.constant 0 : i32
    %c0_i32_1 = arith.constant 0 : i32
    %c0_i32_2 = arith.constant 0 : i32
    return %c0_i32, %c0_i32_0, %c0_i32_1 : i32, i32, i32
  }
  func.func @transform_4(%arg0: i32) -> (i32, i32, i32) {
    %c0_i32 = arith.constant 0 : i32
    %c0_i32_0 = arith.constant 0 : i32
    %c0_i32_1 = arith.constant 0 : i32
    %c0_i32_2 = arith.constant 0 : i32
    return %c0_i32, %c0_i32_0, %c0_i32_1 : i32, i32, i32
  }
}

</mosaic_0001>

<llo_original>
// kernel: tpu_custom_call.1
$region0: #{tpu_custom_call.1}
  #allocation0 [shape = 'u32[]', space=smem, size = 0x4, offset = 0x4, fixed_abs, tag = 'smem constant byte address 0x4 - core index']
  #allocation1 [shape = 'u32[72,128]{1,0:T(1,128)}', space=vmem, size = 0x9000, scoped, tag = 'internal scratch']
  %s0 = inlined_call_operand.hbm [shape: f32[2,16,16], index: 0, kind: input, shape index: {}]
  %s1 = inlined_call_operand.hbm [shape: f32[2,16,16], index: 1, kind: input, shape index: {}]
  %s2 = inlined_call_operand.hbm [shape: f32[2,16,16], index: 2, kind: input, shape index: {}]
  %s3 = inlined_call_operand.hbm [shape: f32[2,16,32], index: 3, kind: input, shape index: {}]
  %s4 = inlined_call_operand.hbm [shape: f32[2,16,32], index: 4, kind: output, shape index: {}]
  %s5 = sld [smem:[#allocation0]]
  $region42: #{tpu_custom_call.1} parent=0
    _
  %s7 = ssub.s32 1, %s5
  %s8 = scalar_select 0, %s7, %s5
  $region1: #{tpu_custom_call.1} parent=0
    #allocation2 [shape = 'u8[16384]{0}', space=vmem, size = 0x4000, scoped, tag = 'input window, operand 0, single buffered']
    #allocation3 [shape = 's32[1]{0}', space=sflag, size = 0x4, scoped, tag = 'scoped memory for tpu_custom_call.1']
    #allocation4 [shape = 's32[1]{0}', space=sflag, size = 0x4, scoped, tag = 'scoped memory for tpu_custom_call.1']
    #allocation5 [shape = 'u8[16384]{0}', space=vmem, size = 0x4000, scoped, tag = 'input window, operand 1, single buffered']
    #allocation6 [shape = 's32[1]{0}', space=sflag, size = 0x4, scoped, tag = 'scoped memory for tpu_custom_call.1']
    #allocation7 [shape = 'u8[16384]{0}', space=vmem, size = 0x4000, scoped, tag = 'input window, operand 2, single buffered']
    #allocation8 [shape = 'u8[16384]{0}', space=vmem, size = 0x4000, scoped, tag = 'input window, operand 3, single buffered']
    #allocation9 [shape = 's32[1]{0}', space=sflag, size = 0x4, scoped, tag = 'scoped memory for tpu_custom_call.1']
    #allocation10 [shape = 'u8[16384]{0}', space=vmem, size = 0x4000, scoped, tag = 'output window, operand 0, single buffered']
    %9 = vsyncpa [#allocation3], 0
    %10 = vsyncpa [#allocation6], 0
    %11 = vsyncpa [#allocation9], 0
    %12 = vsyncpa [#allocation4], 0
    // Predicated region
    $region2: #{tpu_custom_call.1} parent=1 // pred_check
      _
    $region3: #{tpu_custom_call.1} parent=1 // pred_check_branch
      %14 = sbr.rel (0) target = $region5
    $region4: #{tpu_custom_call.1} parent=1 // pred_region
      %16 = vsyncadd [#allocation3], 0
      %s17 = sshll.u32 %s0, 4
      %s18 = int_to_ptr.hbm [resolvable:$true] %s17
      %s19 = sshll.u32 [#allocation2], 4
      %s20 = int_to_ptr.vmem [resolvable:$true] %s19
      %25 = dma.hbm_to_vmem [thread:$0]  %s18, 512, %s20, [#allocation3], 128, 128, 8
    $region5: #{tpu_custom_call.1} parent=1 // pred_fallthru
      _
    // Predicated region
    $region6: #{tpu_custom_call.1} parent=1 // pred_check
      _
    $region7: #{tpu_custom_call.1} parent=1 // pred_check_branch
      %27 = sbr.rel (0) target = $region9
    $region8: #{tpu_custom_call.1} parent=1 // pred_region
      %29 = vsyncadd [#allocation6], 0
      %s30 = sshll.u32 %s1, 4
      %s31 = int_to_ptr.hbm [resolvable:$true] %s30
      %s32 = sshll.u32 [#allocation5], 4
      %s33 = int_to_ptr.vmem [resolvable:$true] %s32
      %38 = dma.hbm_to_vmem [thread:$0]  %s31, 512, %s33, [#allocation6], 128, 128, 8
    $region9: #{tpu_custom_call.1} parent=1 // pred_fallthru
      _
    // Predicated region
    $region10: #{tpu_custom_call.1} parent=1 // pred_check
      _
    $region11: #{tpu_custom_call.1} parent=1 // pred_check_branch
      %40 = sbr.rel (0) target = $region13
    $region12: #{tpu_custom_call.1} parent=1 // pred_region
      %42 = vsyncadd [#allocation6], 0
      %s43 = sshll.u32 %s2, 4
      %s44 = int_to_ptr.hbm [resolvable:$true] %s43
      %s45 = sshll.u32 [#allocation7], 4
      %s46 = int_to_ptr.vmem [resolvable:$true] %s45
      %51 = dma.hbm_to_vmem [thread:$0]  %s44, 512, %s46, [#allocation6], 128, 128, 8
    $region13: #{tpu_custom_call.1} parent=1 // pred_fallthru
      _
    // Predicated region
    $region14: #{tpu_custom_call.1} parent=1 // pred_check
      _
    $region15: #{tpu_custom_call.1} parent=1 // pred_check_branch
      %53 = sbr.rel (0) target = $region17
    $region16: #{tpu_custom_call.1} parent=1 // pred_region
      %55 = vsyncadd [#allocation9], 0
      %s56 = sshll.u32 %s3, 4
      %s57 = int_to_ptr.hbm [resolvable:$true] %s56
      %s58 = sshll.u32 [#allocation8], 4
      %s59 = int_to_ptr.vmem [resolvable:$true] %s58
      %64 = dma.hbm_to_vmem [thread:$0]  %s57, 512, %s59, [#allocation9], 128, 128, 8
    $region17: #{tpu_custom_call.1} parent=1 // pred_fallthru
      _
    // Predicated region
    $region18: #{tpu_custom_call.1} parent=1 // pred_check
      _
    $region19: #{tpu_custom_call.1} parent=1 // pred_check_branch
      %66 = sbr.rel (0) target = $region21
    $region20: #{tpu_custom_call.1} parent=1 // pred_region
      %68 = dma.done [#allocation3], 512
    $region21: #{tpu_custom_call.1} parent=1 // pred_fallthru
      _
    // Predicated region
    $region22: #{tpu_custom_call.1} parent=1 // pred_check
      _
    $region23: #{tpu_custom_call.1} parent=1 // pred_check_branch
      %70 = sbr.rel (0) target = $region25
    $region24: #{tpu_custom_call.1} parent=1 // pred_region
      %72 = dma.done [#allocation6], 512
    $region25: #{tpu_custom_call.1} parent=1 // pred_fallthru
      _
    // Predicated region
    $region26: #{tpu_custom_call.1} parent=1 // pred_check
      _
    $region27: #{tpu_custom_call.1} parent=1 // pred_check_branch
      %74 = sbr.rel (0) target = $region29
    $region28: #{tpu_custom_call.1} parent=1 // pred_region
      %76 = dma.done [#allocation6], 512
    $region29: #{tpu_custom_call.1} parent=1 // pred_fallthru
      _
    // Predicated region
    $region30: #{tpu_custom_call.1} parent=1 // pred_check
      _
    $region31: #{tpu_custom_call.1} parent=1 // pred_check_branch
      %78 = sbr.rel (0) target = $region33
    $region32: #{tpu_custom_call.1} parent=1 // pred_region
      %80 = dma.done [#allocation9], 512
    $region33: #{tpu_custom_call.1} parent=1 // pred_fallthru
      _
    %v81 = vld [vmem:[#allocation2] sm:$0xff]
    %v82 = vld [vmem:[#allocation2 + $0x8] sm:$0xff]
    %v83 = vld [vmem:[#allocation2 + $0x10] sm:$0xff]
    %v84 = vld [vmem:[#allocation2 + $0x18] sm:$0xff]
    %v85 = vld [vmem:[#allocation5] sm:$0xff]
    %v86 = vld [vmem:[#allocation5 + $0x8] sm:$0xff]
    %v87 = vld [vmem:[#allocation5 + $0x10] sm:$0xff]
    %v88 = vld [vmem:[#allocation5 + $0x18] sm:$0xff]
    %v89 = vld [vmem:[#allocation7] sm:$0xff]
    %v90 = vld [vmem:[#allocation7 + $0x8] sm:$0xff]
    %v91 = vld [vmem:[#allocation7 + $0x10] sm:$0xff]
    %v92 = vld [vmem:[#allocation7 + $0x18] sm:$0xff]
    %v93 = vld [vmem:[#allocation8] sm:$0xff]
    %v94 = vld [vmem:[#allocation8 + $0x8] sm:$0xff]
    %v95 = vld [vmem:[#allocation8 + $0x10] sm:$0xff]
    %v96 = vld [vmem:[#allocation8 + $0x18] sm:$0xff]
    %vm97 = vcmask 130048
    %v99 = vsel %vm97, %v85, 0
    %v102 = vsel %vm97, %v86, 0
    %104 = vmatpush.msra.mxu0 0.0
    %105 = vmatpush.msra.mxu0 0.0
    %106 = vmatpush.msra.mxu0 0.0
    %107 = vmatpush.msra.mxu0 0.0
    %108 = vmatpush.msra.mxu0 0.0
    %109 = vmatpush.msra.mxu0 0.0
    %110 = vmatpush.msra.mxu0 0.0
    %111 = vmatpush.msra.mxu0 0.0
    %112 = vmatpush.msra.mxu0 0.0
    %113 = vmatpush.msra.mxu0 0.0
    %114 = vmatpush.msra.mxu0 0.0
    %115 = vmatpush.msra.mxu0 0.0
    %116 = vmatpush.msra.mxu0 0.0
    %117 = vmatpush.msra.mxu0 0.0
    %v118 = vand.u32 %v90, 4294901760
    %119 = vmatpush.msra.mxu0 %v118
    %v120 = vand.u32 %v89, 4294901760
    %121 = vmatpush.msra.mxu0 %v120
    %v122 = vand.u32 %v99, 4294901760
    %v123 = vsub.f32 %v99, %v122
    %v124 = vand.u32 %v123, 4294901760
    %v125 = vsub.f32 %v123, %v124
    %v126 = vand.u32 %v125, 4294901760
    %127 = vmatmul.f32.gmra.mxu0 %v126
    %v128 = vpop.f32.mrf.mxu0
    %v129 = vadd.f32 0.0, %v128
    %v130 = vand.u32 %v102, 4294901760
    %v131 = vsub.f32 %v102, %v130
    %v132 = vand.u32 %v131, 4294901760
    %v133 = vsub.f32 %v131, %v132
    %v134 = vand.u32 %v133, 4294901760
    %135 = vmatmul.f32.gmra.mxu0 %v134
    %v136 = vpop.f32.mrf.mxu0
    %v137 = vadd.f32 0.0, %v136
    %138 = vdwg.mxu0
    %139 = vmatpush.msra.mxu0 0.0
    %140 = vmatpush.msra.mxu0 0.0
    %141 = vmatpush.msra.mxu0 0.0
    %142 = vmatpush.msra.mxu0 0.0
    %143 = vmatpush.msra.mxu0 0.0
    %144 = vmatpush.msra.mxu0 0.0
    %145 = vmatpush.msra.mxu0 0.0
    %146 = vmatpush.msra.mxu0 0.0
    %147 = vmatpush.msra.mxu0 0.0
    %148 = vmatpush.msra.mxu0 0.0
    %149 = vmatpush.msra.mxu0 0.0
    %150 = vmatpush.msra.mxu0 0.0
    %151 = vmatpush.msra.mxu0 0.0
    %152 = vmatpush.msra.mxu0 0.0
    %v153 = vand.u32 %v90, 4294901760
    %v154 = vsub.f32 %v90, %v153
    %v155 = vand.u32 %v154, 4294901760
    %v156 = vsub.f32 %v154, %v155
    %v157 = vand.u32 %v156, 4294901760
    %158 = vmatpush.msra.mxu0 %v157
    %v159 = vand.u32 %v89, 4294901760
    %v160 = vsub.f32 %v89, %v159
    %v161 = vand.u32 %v160, 4294901760
    %v162 = vsub.f32 %v160, %v161
    %v163 = vand.u32 %v162, 4294901760
    %164 = vmatpush.msra.mxu0 %v163
    %v165 = vand.u32 %v99, 4294901760
    %166 = vmatmul.f32.gmra.mxu0 %v165
    %v167 = vpop.f32.mrf.mxu0
    %v168 = vadd.f32 %v129, %v167
    %v169 = vand.u32 %v102, 4294901760
    %170 = vmatmul.f32.gmra.mxu0 %v169
    %v171 = vpop.f32.mrf.mxu0
    %v172 = vadd.f32 %v137, %v171
    %173 = vdwg.mxu0
    %174 = vmatpush.msra.mxu0 0.0
    %175 = vmatpush.msra.mxu0 0.0
    %176 = vmatpush.msra.mxu0 0.0
    %177 = vmatpush.msra.mxu0 0.0
    %178 = vmatpush.msra.mxu0 0.0
    %179 = vmatpush.msra.mxu0 0.0
    %180 = vmatpush.msra.mxu0 0.0
    %181 = vmatpush.msra.mxu0 0.0
    %182 = vmatpush.msra.mxu0 0.0
    %183 = vmatpush.msra.mxu0 0.0
    %184 = vmatpush.msra.mxu0 0.0
    %185 = vmatpush.msra.mxu0 0.0
    %186 = vmatpush.msra.mxu0 0.0
    %187 = vmatpush.msra.mxu0 0.0
    %v188 = vand.u32 %v90, 4294901760
    %v189 = vsub.f32 %v90, %v188
    %190 = vmatpush.msra.mxu0 %v189
    %v191 = vand.u32 %v89, 4294901760
    %v192 = vsub.f32 %v89, %v191
    %193 = vmatpush.msra.mxu0 %v192
    %v194 = vand.u32 %v99, 4294901760
    %v195 = vsub.f32 %v99, %v194
    %196 = vmatmul.f32.gmra.mxu0 %v195
    %v197 = vpop.f32.mrf.mxu0
    %v198 = vadd.f32 %v168, %v197
    %v199 = vand.u32 %v102, 4294901760
    %v200 = vsub.f32 %v102, %v199
    %201 = vmatmul.f32.gmra.mxu0 %v200
    %v202 = vpop.f32.mrf.mxu0
    %v203 = vadd.f32 %v172, %v202
    %204 = vdwg.mxu0
    %205 = vmatpush.msra.mxu0 0.0
    %206 = vmatpush.msra.mxu0 0.0
    %207 = vmatpush.msra.mxu0 0.0
    %208 = vmatpush.msra.mxu0 0.0
    %209 = vmatpush.msra.mxu0 0.0
    %210 = vmatpush.msra.mxu0 0.0
    %211 = vmatpush.msra.mxu0 0.0
    %212 = vmatpush.msra.mxu0 0.0
    %213 = vmatpush.msra.mxu0 0.0
    %214 = vmatpush.msra.mxu0 0.0
    %215 = vmatpush.msra.mxu0 0.0
    %216 = vmatpush.msra.mxu0 0.0
    %217 = vmatpush.msra.mxu0 0.0
    %218 = vmatpush.msra.mxu0 0.0
    %v219 = vand.u32 %v90, 4294901760
    %220 = vmatpush.msra.mxu0 %v219
    %v221 = vand.u32 %v89, 4294901760
    %222 = vmatpush.msra.mxu0 %v221
    %v223 = vand.u32 %v99, 4294901760
    %v224 = vsub.f32 %v99, %v223
    %v225 = vand.u32 %v224, 4294901760
    %226 = vmatmul.f32.gmra.mxu0 %v225
    %v227 = vpop.f32.mrf.mxu0
    %v228 = vadd.f32 %v198, %v227
    %v229 = vand.u32 %v102, 4294901760
    %v230 = vsub.f32 %v102, %v229
    %v231 = vand.u32 %v230, 4294901760
    %232 = vmatmul.f32.gmra.mxu0 %v231
    %v233 = vpop.f32.mrf.mxu0
    %v234 = vadd.f32 %v203, %v233
    %235 = vdwg.mxu0
    %236 = vmatpush.msra.mxu0 0.0
    %237 = vmatpush.msra.mxu0 0.0
    %238 = vmatpush.msra.mxu0 0.0
    %239 = vmatpush.msra.mxu0 0.0
    %240 = vmatpush.msra.mxu0 0.0
    %241 = vmatpush.msra.mxu0 0.0
    %242 = vmatpush.msra.mxu0 0.0
    %243 = vmatpush.msra.mxu0 0.0
    %244 = vmatpush.msra.mxu0 0.0
    %245 = vmatpush.msra.mxu0 0.0
    %246 = vmatpush.msra.mxu0 0.0
    %247 = vmatpush.msra.mxu0 0.0
    %248 = vmatpush.msra.mxu0 0.0
    %249 = vmatpush.msra.mxu0 0.0
    %v250 = vand.u32 %v90, 4294901760
    %v251 = vsub.f32 %v90, %v250
    %v252 = vand.u32 %v251, 4294901760
    %253 = vmatpush.msra.mxu0 %v252
    %v254 = vand.u32 %v89, 4294901760
    %v255 = vsub.f32 %v89, %v254
    %v256 = vand.u32 %v255, 4294901760
    %257 = vmatpush.msra.mxu0 %v256
    %v258 = vand.u32 %v99, 4294901760
    %259 = vmatmul.f32.gmra.mxu0 %v258
    %v260 = vpop.f32.mrf.mxu0
    %v261 = vadd.f32 %v228, %v260
    %v262 = vand.u32 %v102, 4294901760
    %263 = vmatmul.f32.gmra.mxu0 %v262
    %v264 = vpop.f32.mrf.mxu0
    %v265 = vadd.f32 %v234, %v264
    %266 = vdwg.mxu0
    %267 = vmatpush.msra.mxu0 0.0
    %268 = vmatpush.msra.mxu0 0.0
    %269 = vmatpush.msra.mxu0 0.0
    %270 = vmatpush.msra.mxu0 0.0
    %271 = vmatpush.msra.mxu0 0.0
    %272 = vmatpush.msra.mxu0 0.0
    %273 = vmatpush.msra.mxu0 0.0
    %274 = vmatpush.msra.mxu0 0.0
    %275 = vmatpush.msra.mxu0 0.0
    %276 = vmatpush.msra.mxu0 0.0
    %277 = vmatpush.msra.mxu0 0.0
    %278 = vmatpush.msra.mxu0 0.0
    %279 = vmatpush.msra.mxu0 0.0
    %280 = vmatpush.msra.mxu0 0.0
    %v281 = vand.u32 %v90, 4294901760
    %282 = vmatpush.msra.mxu0 %v281
    %v283 = vand.u32 %v89, 4294901760
    %284 = vmatpush.msra.mxu0 %v283
    %v285 = vand.u32 %v99, 4294901760
    %286 = vmatmul.f32.gmra.mxu0 %v285
    %v287 = vpop.f32.mrf.mxu0
    %v288 = vadd.f32 %v261, %v287
    %v289 = vand.u32 %v102, 4294901760
    %290 = vmatmul.f32.gmra.mxu0 %v289
    %v291 = vpop.f32.mrf.mxu0
    %v292 = vadd.f32 %v265, %v291
    %293 = vdwg.mxu0
    %v295 = vsel %vm97, %v87, 0
    %v298 = vsel %vm97, %v88, 0
    %300 = vmatpush.msra.mxu0 0.0
    %301 = vmatpush.msra.mxu0 0.0
    %302 = vmatpush.msra.mxu0 0.0
    %303 = vmatpush.msra.mxu0 0.0
    %304 = vmatpush.msra.mxu0 0.0
    %305 = vmatpush.msra.mxu0 0.0
    %306 = vmatpush.msra.mxu0 0.0
    %307 = vmatpush.msra.mxu0 0.0
    %308 = vmatpush.msra.mxu0 0.0
    %309 = vmatpush.msra.mxu0 0.0
    %310 = vmatpush.msra.mxu0 0.0
    %311 = vmatpush.msra.mxu0 0.0
    %312 = vmatpush.msra.mxu0 0.0
    %313 = vmatpush.msra.mxu0 0.0
    %v314 = vand.u32 %v92, 4294901760
    %315 = vmatpush.msra.mxu0 %v314
    %v316 = vand.u32 %v91, 4294901760
    %317 = vmatpush.msra.mxu0 %v316
    %v318 = vand.u32 %v295, 4294901760
    %v319 = vsub.f32 %v295, %v318
    %v320 = vand.u32 %v319, 4294901760
    %v321 = vsub.f32 %v319, %v320
    %v322 = vand.u32 %v321, 4294901760
    %323 = vmatmul.f32.gmra.mxu0 %v322
    %v324 = vpop.f32.mrf.mxu0
    %v325 = vadd.f32 0.0, %v324
    %v326 = vand.u32 %v298, 4294901760
    %v327 = vsub.f32 %v298, %v326
    %v328 = vand.u32 %v327, 4294901760
    %v329 = vsub.f32 %v327, %v328
    %v330 = vand.u32 %v329, 4294901760
    %331 = vmatmul.f32.gmra.mxu0 %v330
    %v332 = vpop.f32.mrf.mxu0
    %v333 = vadd.f32 0.0, %v332
    %334 = vdwg.mxu0
    %335 = vmatpush.msra.mxu0 0.0
    %336 = vmatpush.msra.mxu0 0.0
    %337 = vmatpush.msra.mxu0 0.0
    %338 = vmatpush.msra.mxu0 0.0
    %339 = vmatpush.msra.mxu0 0.0
    %340 = vmatpush.msra.mxu0 0.0
    %341 = vmatpush.msra.mxu0 0.0
    %342 = vmatpush.msra.mxu0 0.0
    %343 = vmatpush.msra.mxu0 0.0
    %344 = vmatpush.msra.mxu0 0.0
    %345 = vmatpush.msra.mxu0 0.0
    %346 = vmatpush.msra.mxu0 0.0
    %347 = vmatpush.msra.mxu0 0.0
    %348 = vmatpush.msra.mxu0 0.0
    %v349 = vand.u32 %v92, 4294901760
    %v350 = vsub.f32 %v92, %v349
    %v351 = vand.u32 %v350, 4294901760
    %v352 = vsub.f32 %v350, %v351
    %v353 = vand.u32 %v352, 4294901760
    %354 = vmatpush.msra.mxu0 %v353
    %v355 = vand.u32 %v91, 4294901760
    %v356 = vsub.f32 %v91, %v355
    %v357 = vand.u32 %v356, 4294901760
    %v358 = vsub.f32 %v356, %v357
    %v359 = vand.u32 %v358, 4294901760
    %360 = vmatpush.msra.mxu0 %v359
    %v361 = vand.u32 %v295, 4294901760
    %362 = vmatmul.f32.gmra.mxu0 %v361
    %v363 = vpop.f32.mrf.mxu0
    %v364 = vadd.f32 %v325, %v363
    %v365 = vand.u32 %v298, 4294901760
    %366 = vmatmul.f32.gmra.mxu0 %v365
    %v367 = vpop.f32.mrf.mxu0
    %v368 = vadd.f32 %v333, %v367
    %369 = vdwg.mxu0
    %370 = vmatpush.msra.mxu0 0.0
    %371 = vmatpush.msra.mxu0 0.0
    %372 = vmatpush.msra.mxu0 0.0
    %373 = vmatpush.msra.mxu0 0.0
    %374 = vmatpush.msra.mxu0 0.0
    %375 = vmatpush.msra.mxu0 0.0
    %376 = vmatpush.msra.mxu0 0.0
    %377 = vmatpush.msra.mxu0 0.0
    %378 = vmatpush.msra.mxu0 0.0
    %379 = vmatpush.msra.mxu0 0.0
    %380 = vmatpush.msra.mxu0 0.0
    %381 = vmatpush.msra.mxu0 0.0
    %382 = vmatpush.msra.mxu0 0.0
    %383 = vmatpush.msra.mxu0 0.0
    %v384 = vand.u32 %v92, 4294901760
    %v385 = vsub.f32 %v92, %v384
    %386 = vmatpush.msra.mxu0 %v385
    %v387 = vand.u32 %v91, 4294901760
    %v388 = vsub.f32 %v91, %v387
    %389 = vmatpush.msra.mxu0 %v388
    %v390 = vand.u32 %v295, 4294901760
    %v391 = vsub.f32 %v295, %v390
    %392 = vmatmul.f32.gmra.mxu0 %v391
    %v393 = vpop.f32.mrf.mxu0
    %v394 = vadd.f32 %v364, %v393
    %v395 = vand.u32 %v298, 4294901760
    %v396 = vsub.f32 %v298, %v395
    %397 = vmatmul.f32.gmra.mxu0 %v396
    %v398 = vpop.f32.mrf.mxu0
    %v399 = vadd.f32 %v368, %v398
    %400 = vdwg.mxu0
    %401 = vmatpush.msra.mxu0 0.0
    %402 = vmatpush.msra.mxu0 0.0
    %403 = vmatpush.msra.mxu0 0.0
    %404 = vmatpush.msra.mxu0 0.0
    %405 = vmatpush.msra.mxu0 0.0
    %406 = vmatpush.msra.mxu0 0.0
    %407 = vmatpush.msra.mxu0 0.0
    %408 = vmatpush.msra.mxu0 0.0
    %409 = vmatpush.msra.mxu0 0.0
    %410 = vmatpush.msra.mxu0 0.0
    %411 = vmatpush.msra.mxu0 0.0
    %412 = vmatpush.msra.mxu0 0.0
    %413 = vmatpush.msra.mxu0 0.0
    %414 = vmatpush.msra.mxu0 0.0
    %v415 = vand.u32 %v92, 4294901760
    %416 = vmatpush.msra.mxu0 %v415
    %v417 = vand.u32 %v91, 4294901760
    %418 = vmatpush.msra.mxu0 %v417
    %v419 = vand.u32 %v295, 4294901760
    %v420 = vsub.f32 %v295, %v419
    %v421 = vand.u32 %v420, 4294901760
    %422 = vmatmul.f32.gmra.mxu0 %v421
    %v423 = vpop.f32.mrf.mxu0
    %v424 = vadd.f32 %v394, %v423
    %v425 = vand.u32 %v298, 4294901760
    %v426 = vsub.f32 %v298, %v425
    %v427 = vand.u32 %v426, 4294901760
    %428 = vmatmul.f32.gmra.mxu0 %v427
    %v429 = vpop.f32.mrf.mxu0
    %v430 = vadd.f32 %v399, %v429
    %431 = vdwg.mxu0
    %432 = vmatpush.msra.mxu0 0.0
    %433 = vmatpush.msra.mxu0 0.0
    %434 = vmatpush.msra.mxu0 0.0
    %435 = vmatpush.msra.mxu0 0.0
    %436 = vmatpush.msra.mxu0 0.0
    %437 = vmatpush.msra.mxu0 0.0
    %438 = vmatpush.msra.mxu0 0.0
    %439 = vmatpush.msra.mxu0 0.0
    %440 = vmatpush.msra.mxu0 0.0
    %441 = vmatpush.msra.mxu0 0.0
    %442 = vmatpush.msra.mxu0 0.0
    %443 = vmatpush.msra.mxu0 0.0
    %444 = vmatpush.msra.mxu0 0.0
    %445 = vmatpush.msra.mxu0 0.0
    %v446 = vand.u32 %v92, 4294901760
    %v447 = vsub.f32 %v92, %v446
    %v448 = vand.u32 %v447, 4294901760
    %449 = vmatpush.msra.mxu0 %v448
    %v450 = vand.u32 %v91, 4294901760
    %v451 = vsub.f32 %v91, %v450
    %v452 = vand.u32 %v451, 4294901760
    %453 = vmatpush.msra.mxu0 %v452
    %v454 = vand.u32 %v295, 4294901760
    %455 = vmatmul.f32.gmra.mxu0 %v454
    %v456 = vpop.f32.mrf.mxu0
    %v457 = vadd.f32 %v424, %v456
    %v458 = vand.u32 %v298, 4294901760
    %459 = vmatmul.f32.gmra.mxu0 %v458
    %v460 = vpop.f32.mrf.mxu0
    %v461 = vadd.f32 %v430, %v460
    %462 = vdwg.mxu0
    %463 = vmatpush.msra.mxu0 0.0
    %464 = vmatpush.msra.mxu0 0.0
    %465 = vmatpush.msra.mxu0 0.0
    %466 = vmatpush.msra.mxu0 0.0
    %467 = vmatpush.msra.mxu0 0.0
    %468 = vmatpush.msra.mxu0 0.0
    %469 = vmatpush.msra.mxu0 0.0
    %470 = vmatpush.msra.mxu0 0.0
    %471 = vmatpush.msra.mxu0 0.0
    %472 = vmatpush.msra.mxu0 0.0
    %473 = vmatpush.msra.mxu0 0.0
    %474 = vmatpush.msra.mxu0 0.0
    %475 = vmatpush.msra.mxu0 0.0
    %476 = vmatpush.msra.mxu0 0.0
    %v477 = vand.u32 %v92, 4294901760
    %478 = vmatpush.msra.mxu0 %v477
    %v479 = vand.u32 %v91, 4294901760
    %480 = vmatpush.msra.mxu0 %v479
    %v481 = vand.u32 %v295, 4294901760
    %482 = vmatmul.f32.gmra.mxu0 %v481
    %v483 = vpop.f32.mrf.mxu0
    %v484 = vadd.f32 %v457, %v483
    %v485 = vand.u32 %v298, 4294901760
    %486 = vmatmul.f32.gmra.mxu0 %v485
    %v487 = vpop.f32.mrf.mxu0
    %v488 = vadd.f32 %v461, %v487
    %489 = vdwg.mxu0
    %v490 = vadd.f32 %v81, %v288
    %v491 = vadd.f32 %v82, %v292
    %v492 = vadd.f32 %v83, %v484
    %v493 = vadd.f32 %v84, %v488
    %v495 = vsel %vm97, %v490, 0
    %v498 = vsel %vm97, %v491, 0
    %500 = vmatpush.msra.mxu0 0.0
    %501 = vmatpush.msra.mxu0 0.0
    %502 = vmatpush.msra.mxu0 0.0
    %503 = vmatpush.msra.mxu0 0.0
    %504 = vmatpush.msra.mxu0 0.0
    %505 = vmatpush.msra.mxu0 0.0
    %506 = vmatpush.msra.mxu0 0.0
    %507 = vmatpush.msra.mxu0 0.0
    %508 = vmatpush.msra.mxu0 0.0
    %509 = vmatpush.msra.mxu0 0.0
    %510 = vmatpush.msra.mxu0 0.0
    %511 = vmatpush.msra.mxu0 0.0
    %512 = vmatpush.msra.mxu0 0.0
    %513 = vmatpush.msra.mxu0 0.0
    %v514 = vand.u32 %v94, 4294901760
    %515 = vmatpush.msra.mxu0 %v514
    %v516 = vand.u32 %v93, 4294901760
    %517 = vmatpush.msra.mxu0 %v516
    %v518 = vand.u32 %v495, 4294901760
    %v519 = vsub.f32 %v495, %v518
    %v520 = vand.u32 %v519, 4294901760
    %v521 = vsub.f32 %v519, %v520
    %v522 = vand.u32 %v521, 4294901760
    %523 = vmatmul.f32.gmra.mxu0 %v522
    %v524 = vpop.f32.mrf.mxu0
    %v525 = vadd.f32 0.0, %v524
    %v526 = vand.u32 %v498, 4294901760
    %v527 = vsub.f32 %v498, %v526
    %v528 = vand.u32 %v527, 4294901760
    %v529 = vsub.f32 %v527, %v528
    %v530 = vand.u32 %v529, 4294901760
    %531 = vmatmul.f32.gmra.mxu0 %v530
    %v532 = vpop.f32.mrf.mxu0
    %v533 = vadd.f32 0.0, %v532
    %534 = vdwg.mxu0
    %535 = vmatpush.msra.mxu0 0.0
    %536 = vmatpush.msra.mxu0 0.0
    %537 = vmatpush.msra.mxu0 0.0
    %538 = vmatpush.msra.mxu0 0.0
    %539 = vmatpush.msra.mxu0 0.0
    %540 = vmatpush.msra.mxu0 0.0
    %541 = vmatpush.msra.mxu0 0.0
    %542 = vmatpush.msra.mxu0 0.0
    %543 = vmatpush.msra.mxu0 0.0
    %544 = vmatpush.msra.mxu0 0.0
    %545 = vmatpush.msra.mxu0 0.0
    %546 = vmatpush.msra.mxu0 0.0
    %547 = vmatpush.msra.mxu0 0.0
    %548 = vmatpush.msra.mxu0 0.0
    %v549 = vand.u32 %v94, 4294901760
    %v550 = vsub.f32 %v94, %v549
    %v551 = vand.u32 %v550, 4294901760
    %v552 = vsub.f32 %v550, %v551
    %v553 = vand.u32 %v552, 4294901760
    %554 = vmatpush.msra.mxu0 %v553
    %v555 = vand.u32 %v93, 4294901760
    %v556 = vsub.f32 %v93, %v555
    %v557 = vand.u32 %v556, 4294901760
    %v558 = vsub.f32 %v556, %v557
    %v559 = vand.u32 %v558, 4294901760
    %560 = vmatpush.msra.mxu0 %v559
    %v561 = vand.u32 %v495, 4294901760
    %562 = vmatmul.f32.gmra.mxu0 %v561
    %v563 = vpop.f32.mrf.mxu0
    %v564 = vadd.f32 %v525, %v563
    %v565 = vand.u32 %v498, 4294901760
    %566 = vmatmul.f32.gmra.mxu0 %v565
    %v567 = vpop.f32.mrf.mxu0
    %v568 = vadd.f32 %v533, %v567
    %569 = vdwg.mxu0
    %570 = vmatpush.msra.mxu0 0.0
    %571 = vmatpush.msra.mxu0 0.0
    %572 = vmatpush.msra.mxu0 0.0
    %573 = vmatpush.msra.mxu0 0.0
    %574 = vmatpush.msra.mxu0 0.0
    %575 = vmatpush.msra.mxu0 0.0
    %576 = vmatpush.msra.mxu0 0.0
    %577 = vmatpush.msra.mxu0 0.0
    %578 = vmatpush.msra.mxu0 0.0
    %579 = vmatpush.msra.mxu0 0.0
    %580 = vmatpush.msra.mxu0 0.0
    %581 = vmatpush.msra.mxu0 0.0
    %582 = vmatpush.msra.mxu0 0.0
    %583 = vmatpush.msra.mxu0 0.0
    %v584 = vand.u32 %v94, 4294901760
    %v585 = vsub.f32 %v94, %v584
    %586 = vmatpush.msra.mxu0 %v585
    %v587 = vand.u32 %v93, 4294901760
    %v588 = vsub.f32 %v93, %v587
    %589 = vmatpush.msra.mxu0 %v588
    %v590 = vand.u32 %v495, 4294901760
    %v591 = vsub.f32 %v495, %v590
    %592 = vmatmul.f32.gmra.mxu0 %v591
    %v593 = vpop.f32.mrf.mxu0
    %v594 = vadd.f32 %v564, %v593
    %v595 = vand.u32 %v498, 4294901760
    %v596 = vsub.f32 %v498, %v595
    %597 = vmatmul.f32.gmra.mxu0 %v596
    %v598 = vpop.f32.mrf.mxu0
    %v599 = vadd.f32 %v568, %v598
    %600 = vdwg.mxu0
    %601 = vmatpush.msra.mxu0 0.0
    %602 = vmatpush.msra.mxu0 0.0
    %603 = vmatpush.msra.mxu0 0.0
    %604 = vmatpush.msra.mxu0 0.0
    %605 = vmatpush.msra.mxu0 0.0
    %606 = vmatpush.msra.mxu0 0.0
    %607 = vmatpush.msra.mxu0 0.0
    %608 = vmatpush.msra.mxu0 0.0
    %609 = vmatpush.msra.mxu0 0.0
    %610 = vmatpush.msra.mxu0 0.0
    %611 = vmatpush.msra.mxu0 0.0
    %612 = vmatpush.msra.mxu0 0.0
    %613 = vmatpush.msra.mxu0 0.0
    %614 = vmatpush.msra.mxu0 0.0
    %v615 = vand.u32 %v94, 4294901760
    %616 = vmatpush.msra.mxu0 %v615
    %v617 = vand.u32 %v93, 4294901760
    %618 = vmatpush.msra.mxu0 %v617
    %v619 = vand.u32 %v495, 4294901760
    %v620 = vsub.f32 %v495, %v619
    %v621 = vand.u32 %v620, 4294901760
    %622 = vmatmul.f32.gmra.mxu0 %v621
    %v623 = vpop.f32.mrf.mxu0
    %v624 = vadd.f32 %v594, %v623
    %v625 = vand.u32 %v498, 4294901760
    %v626 = vsub.f32 %v498, %v625
    %v627 = vand.u32 %v626, 4294901760
    %628 = vmatmul.f32.gmra.mxu0 %v627
    %v629 = vpop.f32.mrf.mxu0
    %v630 = vadd.f32 %v599, %v629
    %631 = vdwg.mxu0
    %632 = vmatpush.msra.mxu0 0.0
    %633 = vmatpush.msra.mxu0 0.0
    %634 = vmatpush.msra.mxu0 0.0
    %635 = vmatpush.msra.mxu0 0.0
    %636 = vmatpush.msra.mxu0 0.0
    %637 = vmatpush.msra.mxu0 0.0
    %638 = vmatpush.msra.mxu0 0.0
    %639 = vmatpush.msra.mxu0 0.0
    %640 = vmatpush.msra.mxu0 0.0
    %641 = vmatpush.msra.mxu0 0.0
    %642 = vmatpush.msra.mxu0 0.0
    %643 = vmatpush.msra.mxu0 0.0
    %644 = vmatpush.msra.mxu0 0.0
    %645 = vmatpush.msra.mxu0 0.0
    %v646 = vand.u32 %v94, 4294901760
    %v647 = vsub.f32 %v94, %v646
    %v648 = vand.u32 %v647, 4294901760
    %649 = vmatpush.msra.mxu0 %v648
    %v650 = vand.u32 %v93, 4294901760
    %v651 = vsub.f32 %v93, %v650
    %v652 = vand.u32 %v651, 4294901760
    %653 = vmatpush.msra.mxu0 %v652
    %v654 = vand.u32 %v495, 4294901760
    %655 = vmatmul.f32.gmra.mxu0 %v654
    %v656 = vpop.f32.mrf.mxu0
    %v657 = vadd.f32 %v624, %v656
    %v658 = vand.u32 %v498, 4294901760
    %659 = vmatmul.f32.gmra.mxu0 %v658
    %v660 = vpop.f32.mrf.mxu0
    %v661 = vadd.f32 %v630, %v660
    %662 = vdwg.mxu0
    %663 = vmatpush.msra.mxu0 0.0
    %664 = vmatpush.msra.mxu0 0.0
    %665 = vmatpush.msra.mxu0 0.0
    %666 = vmatpush.msra.mxu0 0.0
    %667 = vmatpush.msra.mxu0 0.0
    %668 = vmatpush.msra.mxu0 0.0
    %669 = vmatpush.msra.mxu0 0.0
    %670 = vmatpush.msra.mxu0 0.0
    %671 = vmatpush.msra.mxu0 0.0
    %672 = vmatpush.msra.mxu0 0.0
    %673 = vmatpush.msra.mxu0 0.0
    %674 = vmatpush.msra.mxu0 0.0
    %675 = vmatpush.msra.mxu0 0.0
    %676 = vmatpush.msra.mxu0 0.0
    %v677 = vand.u32 %v94, 4294901760
    %678 = vmatpush.msra.mxu0 %v677
    %v679 = vand.u32 %v93, 4294901760
    %680 = vmatpush.msra.mxu0 %v679
    %v681 = vand.u32 %v495, 4294901760
    %682 = vmatmul.f32.gmra.mxu0 %v681
    %v683 = vpop.f32.mrf.mxu0
    %v684 = vadd.f32 %v657, %v683
    %v685 = vand.u32 %v498, 4294901760
    %686 = vmatmul.f32.gmra.mxu0 %v685
    %v687 = vpop.f32.mrf.mxu0
    %v688 = vadd.f32 %v661, %v687
    %689 = vdwg.mxu0
    %v691 = vsel %vm97, %v492, 0
    %v694 = vsel %vm97, %v493, 0
    %696 = vmatpush.msra.mxu0 0.0
    %697 = vmatpush.msra.mxu0 0.0
    %698 = vmatpush.msra.mxu0 0.0
    %699 = vmatpush.msra.mxu0 0.0
    %700 = vmatpush.msra.mxu0 0.0
    %701 = vmatpush.msra.mxu0 0.0
    %702 = vmatpush.msra.mxu0 0.0
    %703 = vmatpush.msra.mxu0 0.0
    %704 = vmatpush.msra.mxu0 0.0
    %705 = vmatpush.msra.mxu0 0.0
    %706 = vmatpush.msra.mxu0 0.0
    %707 = vmatpush.msra.mxu0 0.0
    %708 = vmatpush.msra.mxu0 0.0
    %709 = vmatpush.msra.mxu0 0.0
    %v710 = vand.u32 %v96, 4294901760
    %711 = vmatpush.msra.mxu0 %v710
    %v712 = vand.u32 %v95, 4294901760
    %713 = vmatpush.msra.mxu0 %v712
    %v714 = vand.u32 %v691, 4294901760
    %v715 = vsub.f32 %v691, %v714
    %v716 = vand.u32 %v715, 4294901760
    %v717 = vsub.f32 %v715, %v716
    %v718 = vand.u32 %v717, 4294901760
    %719 = vmatmul.f32.gmra.mxu0 %v718
    %v720 = vpop.f32.mrf.mxu0
    %v721 = vadd.f32 0.0, %v720
    %v722 = vand.u32 %v694, 4294901760
    %v723 = vsub.f32 %v694, %v722
    %v724 = vand.u32 %v723, 4294901760
    %v725 = vsub.f32 %v723, %v724
    %v726 = vand.u32 %v725, 4294901760
    %727 = vmatmul.f32.gmra.mxu0 %v726
    %v728 = vpop.f32.mrf.mxu0
    %v729 = vadd.f32 0.0, %v728
    %730 = vdwg.mxu0
    %731 = vmatpush.msra.mxu0 0.0
    %732 = vmatpush.msra.mxu0 0.0
    %733 = vmatpush.msra.mxu0 0.0
    %734 = vmatpush.msra.mxu0 0.0
    %735 = vmatpush.msra.mxu0 0.0
    %736 = vmatpush.msra.mxu0 0.0
    %737 = vmatpush.msra.mxu0 0.0
    %738 = vmatpush.msra.mxu0 0.0
    %739 = vmatpush.msra.mxu0 0.0
    %740 = vmatpush.msra.mxu0 0.0
    %741 = vmatpush.msra.mxu0 0.0
    %742 = vmatpush.msra.mxu0 0.0
    %743 = vmatpush.msra.mxu0 0.0
    %744 = vmatpush.msra.mxu0 0.0
    %v745 = vand.u32 %v96, 4294901760
    %v746 = vsub.f32 %v96, %v745
    %v747 = vand.u32 %v746, 4294901760
    %v748 = vsub.f32 %v746, %v747
    %v749 = vand.u32 %v748, 4294901760
    %750 = vmatpush.msra.mxu0 %v749
    %v751 = vand.u32 %v95, 4294901760
    %v752 = vsub.f32 %v95, %v751
    %v753 = vand.u32 %v752, 4294901760
    %v754 = vsub.f32 %v752, %v753
    %v755 = vand.u32 %v754, 4294901760
    %756 = vmatpush.msra.mxu0 %v755
    %v757 = vand.u32 %v691, 4294901760
    %758 = vmatmul.f32.gmra.mxu0 %v757
    %v759 = vpop.f32.mrf.mxu0
    %v760 = vadd.f32 %v721, %v759
    %v761 = vand.u32 %v694, 4294901760
    %762 = vmatmul.f32.gmra.mxu0 %v761
    %v763 = vpop.f32.mrf.mxu0
    %v764 = vadd.f32 %v729, %v763
    %765 = vdwg.mxu0
    %766 = vmatpush.msra.mxu0 0.0
    %767 = vmatpush.msra.mxu0 0.0
    %768 = vmatpush.msra.mxu0 0.0
    %769 = vmatpush.msra.mxu0 0.0
    %770 = vmatpush.msra.mxu0 0.0
    %771 = vmatpush.msra.mxu0 0.0
    %772 = vmatpush.msra.mxu0 0.0
    %773 = vmatpush.msra.mxu0 0.0
    %774 = vmatpush.msra.mxu0 0.0
    %775 = vmatpush.msra.mxu0 0.0
    %776 = vmatpush.msra.mxu0 0.0
    %777 = vmatpush.msra.mxu0 0.0
    %778 = vmatpush.msra.mxu0 0.0
    %779 = vmatpush.msra.mxu0 0.0
    %v780 = vand.u32 %v96, 4294901760
    %v781 = vsub.f32 %v96, %v780
    %782 = vmatpush.msra.mxu0 %v781
    %v783 = vand.u32 %v95, 4294901760
    %v784 = vsub.f32 %v95, %v783
    %785 = vmatpush.msra.mxu0 %v784
    %v786 = vand.u32 %v691, 4294901760
    %v787 = vsub.f32 %v691, %v786
    %788 = vmatmul.f32.gmra.mxu0 %v787
    %v789 = vpop.f32.mrf.mxu0
    %v790 = vadd.f32 %v760, %v789
    %v791 = vand.u32 %v694, 4294901760
    %v792 = vsub.f32 %v694, %v791
    %793 = vmatmul.f32.gmra.mxu0 %v792
    %v794 = vpop.f32.mrf.mxu0
    %v795 = vadd.f32 %v764, %v794
    %796 = vdwg.mxu0
    %797 = vmatpush.msra.mxu0 0.0
    %798 = vmatpush.msra.mxu0 0.0
    %799 = vmatpush.msra.mxu0 0.0
    %800 = vmatpush.msra.mxu0 0.0
    %801 = vmatpush.msra.mxu0 0.0
    %802 = vmatpush.msra.mxu0 0.0
    %803 = vmatpush.msra.mxu0 0.0
    %804 = vmatpush.msra.mxu0 0.0
    %805 = vmatpush.msra.mxu0 0.0
    %806 = vmatpush.msra.mxu0 0.0
    %807 = vmatpush.msra.mxu0 0.0
    %808 = vmatpush.msra.mxu0 0.0
    %809 = vmatpush.msra.mxu0 0.0
    %810 = vmatpush.msra.mxu0 0.0
    %v811 = vand.u32 %v96, 4294901760
    %812 = vmatpush.msra.mxu0 %v811
    %v813 = vand.u32 %v95, 4294901760
    %814 = vmatpush.msra.mxu0 %v813
    %v815 = vand.u32 %v691, 4294901760
    %v816 = vsub.f32 %v691, %v815
    %v817 = vand.u32 %v816, 4294901760
    %818 = vmatmul.f32.gmra.mxu0 %v817
    %v819 = vpop.f32.mrf.mxu0
    %v820 = vadd.f32 %v790, %v819
    %v821 = vand.u32 %v694, 4294901760
    %v822 = vsub.f32 %v694, %v821
    %v823 = vand.u32 %v822, 4294901760
    %824 = vmatmul.f32.gmra.mxu0 %v823
    %v825 = vpop.f32.mrf.mxu0
    %v826 = vadd.f32 %v795, %v825
    %827 = vdwg.mxu0
    %828 = vmatpush.msra.mxu0 0.0
    %829 = vmatpush.msra.mxu0 0.0
    %830 = vmatpush.msra.mxu0 0.0
    %831 = vmatpush.msra.mxu0 0.0
    %832 = vmatpush.msra.mxu0 0.0
    %833 = vmatpush.msra.mxu0 0.0
    %834 = vmatpush.msra.mxu0 0.0
    %835 = vmatpush.msra.mxu0 0.0
    %836 = vmatpush.msra.mxu0 0.0
    %837 = vmatpush.msra.mxu0 0.0
    %838 = vmatpush.msra.mxu0 0.0
    %839 = vmatpush.msra.mxu0 0.0
    %840 = vmatpush.msra.mxu0 0.0
    %841 = vmatpush.msra.mxu0 0.0
    %v842 = vand.u32 %v96, 4294901760
    %v843 = vsub.f32 %v96, %v842
    %v844 = vand.u32 %v843, 4294901760
    %845 = vmatpush.msra.mxu0 %v844
    %v846 = vand.u32 %v95, 4294901760
    %v847 = vsub.f32 %v95, %v846
    %v848 = vand.u32 %v847, 4294901760
    %849 = vmatpush.msra.mxu0 %v848
    %v850 = vand.u32 %v691, 4294901760
    %851 = vmatmul.f32.gmra.mxu0 %v850
    %v852 = vpop.f32.mrf.mxu0
    %v853 = vadd.f32 %v820, %v852
    %v854 = vand.u32 %v694, 4294901760
    %855 = vmatmul.f32.gmra.mxu0 %v854
    %v856 = vpop.f32.mrf.mxu0
    %v857 = vadd.f32 %v826, %v856
    %858 = vdwg.mxu0
    %859 = vmatpush.msra.mxu0 0.0
    %860 = vmatpush.msra.mxu0 0.0
    %861 = vmatpush.msra.mxu0 0.0
    %862 = vmatpush.msra.mxu0 0.0
    %863 = vmatpush.msra.mxu0 0.0
    %864 = vmatpush.msra.mxu0 0.0
    %865 = vmatpush.msra.mxu0 0.0
    %866 = vmatpush.msra.mxu0 0.0
    %867 = vmatpush.msra.mxu0 0.0
    %868 = vmatpush.msra.mxu0 0.0
    %869 = vmatpush.msra.mxu0 0.0
    %870 = vmatpush.msra.mxu0 0.0
    %871 = vmatpush.msra.mxu0 0.0
    %872 = vmatpush.msra.mxu0 0.0
    %v873 = vand.u32 %v96, 4294901760
    %874 = vmatpush.msra.mxu0 %v873
    %v875 = vand.u32 %v95, 4294901760
    %876 = vmatpush.msra.mxu0 %v875
    %v877 = vand.u32 %v691, 4294901760
    %878 = vmatmul.f32.gmra.mxu0 %v877
    %v879 = vpop.f32.mrf.mxu0
    %v880 = vadd.f32 %v853, %v879
    %v881 = vand.u32 %v694, 4294901760
    %882 = vmatmul.f32.gmra.mxu0 %v881
    %v883 = vpop.f32.mrf.mxu0
    %v884 = vadd.f32 %v857, %v883
    %885 = vdwg.mxu0
    %vm886 = vcmask 261120
    %887 = vst.msk [vmem:[#allocation10] sm:$0xff] %vm886, %v684
    %888 = vst.msk [vmem:[#allocation10 + $0x8] sm:$0xff] %vm886, %v688
    %889 = vst.msk [vmem:[#allocation10 + $0x10] sm:$0xff] %vm886, %v880
    %890 = vst.msk [vmem:[#allocation10 + $0x18] sm:$0xff] %vm886, %v884
    // Predicated region
    $region34: #{tpu_custom_call.1} parent=1 // pred_check
      _
    $region35: #{tpu_custom_call.1} parent=1 // pred_check_branch
      %892 = sbr.rel (0) target = $region37
    $region36: #{tpu_custom_call.1} parent=1 // pred_region
      %894 = vsyncadd [#allocation4], 0
      %s895 = sshll.u32 [#allocation10], 4
      %s896 = int_to_ptr.vmem [resolvable:$true] %s895
      %s897 = sshll.u32 %s4, 4
      %s898 = int_to_ptr.hbm [resolvable:$true] %s897
      %903 = dma.vmem_to_hbm [thread:$0]  %s896, 512, %s898, [#allocation4], 128, 128, 8
    $region37: #{tpu_custom_call.1} parent=1 // pred_fallthru
      _
    // Predicated region
    $region38: #{tpu_custom_call.1} parent=1 // pred_check
      _
    $region39: #{tpu_custom_call.1} parent=1 // pred_check_branch
      %905 = sbr.rel (0) target = $region41
    $region40: #{tpu_custom_call.1} parent=1 // pred_region
      %907 = dma.done [#allocation4], 512
    $region41: #{tpu_custom_call.1} parent=1 // pred_fallthru
      _
    %908 = vsyncpa [#allocation3], 1
    %909 = vsyncpa [#allocation6], 1
    %910 = vsyncpa [#allocation9], 1
    %911 = vsyncpa [#allocation4], 1

</llo_original>
